<compile_context>
chip_gen: v7x
topology: tpu7x:2x2x1
jax: 0.10.0
libtpu: 0.0.40
codegen_flags: <defaults>
</compile_context>

<pallas_src>
import jax
import jax.numpy as jnp
from jax.experimental import pallas as pl
from jax.experimental.pallas import tpu as pltpu


def mlp_kernel(x_ref, w1_ref, b1_ref, w2_ref, b2_ref, w3_ref, b3_ref, o_ref):
    cd = w1_ref.dtype  # compute dtype for MXU operands (bf16 or f32)

    # fc1 + ReLU  (f32 accumulate, f32 bias/ReLU)
    h1 = jnp.dot(x_ref[...], w1_ref[...], preferred_element_type=jnp.float32)
    h1 = jnp.maximum(h1 + b1_ref[...], 0.0)

    # fc2 + ReLU
    h2 = jnp.dot(h1.astype(cd), w2_ref[...], preferred_element_type=jnp.float32)
    h2 = jnp.maximum(h2 + b2_ref[...], 0.0)

    # fc3 (no activation)
    out = jnp.dot(h2.astype(cd), w3_ref[...], preferred_element_type=jnp.float32)
    out = out + b3_ref[...]
    o_ref[...] = out.astype(o_ref.dtype)


def _round_up(n, m):
    return ((n + m - 1) // m) * m


def _pad2(a, rows, cols):
    r, c = a.shape
    return jnp.pad(a, ((0, rows - r), (0, cols - c)))


def mlp_forward(x, params, *, batch_tile=256, compute_dtype=jnp.bfloat16):
    """x: (B, input_size) float32. params: dict of (in,out) weights / (1,out) biases.

    Returns (B, output_size) float32, numerically matching
    relu(relu(x@w1+b1)@w2+b2)@w3+b3 (up to compute_dtype precision in the dots).
    """
    w1, b1 = params["w1"], params["b1"]
    w2, b2 = params["w2"], params["b2"]
    w3, b3 = params["w3"], params["b3"]

    B, in_dim = x.shape
    h1_dim, h2_dim, out_dim = w1.shape[1], w2.shape[1], w3.shape[1]

    LANE = 128
    # Pad feature dims to multiples of 128: clean MXU passes + lane-dense stores.
    h1_p = _round_up(h1_dim, LANE)    # 150 -> 256
    h2_p = _round_up(h2_dim, LANE)    # 100 -> 128
    out_p = _round_up(out_dim, LANE)  # e.g. 10 -> 128

    # Batch tile: big enough to fill MXU passes / amortize per-step overhead,
    # but never larger than the (128-rounded) batch itself.
    bt = min(batch_tile, _round_up(B, LANE))
    bt = _round_up(bt, 8)
    B_p = _round_up(B, bt)

    # Zero-pad operands (padding cols/rows contribute exact zeros through
    # matmul/bias/ReLU, so sliced results are unaffected).
    x_p = jnp.pad(x, ((0, B_p - B), (0, 0))).astype(compute_dtype)
    w1_p = _pad2(w1, in_dim, h1_p).astype(compute_dtype)
    w2_p = _pad2(w2, h1_p, h2_p).astype(compute_dtype)
    w3_p = _pad2(w3, h2_p, out_p).astype(compute_dtype)
    b1_p = _pad2(b1, 1, h1_p).astype(jnp.float32)
    b2_p = _pad2(b2, 1, h2_p).astype(jnp.float32)
    b3_p = _pad2(b3, 1, out_p).astype(jnp.float32)

    grid = (B_p // bt,)

    x_spec = pl.BlockSpec((bt, in_dim), lambda i: (i, 0))
    w1_spec = pl.BlockSpec((in_dim, h1_p), lambda i: (0, 0))
    b1_spec = pl.BlockSpec((1, h1_p), lambda i: (0, 0))
    w2_spec = pl.BlockSpec((h1_p, h2_p), lambda i: (0, 0))
    b2_spec = pl.BlockSpec((1, h2_p), lambda i: (0, 0))
    w3_spec = pl.BlockSpec((h2_p, out_p), lambda i: (0, 0))
    b3_spec = pl.BlockSpec((1, out_p), lambda i: (0, 0))
    o_spec = pl.BlockSpec((bt, out_p), lambda i: (i, 0))

    out_padded = pl.pallas_call(
        mlp_kernel,
        out_shape=jax.ShapeDtypeStruct((B_p, out_p), jnp.float32),
        grid_spec=pltpu.PrefetchScalarGridSpec(
            num_scalar_prefetch=0,
            grid=grid,
            in_specs=[x_spec, w1_spec, b1_spec, w2_spec, b2_spec, w3_spec, b3_spec],
            out_specs=o_spec,
        ),
        compiler_params=pltpu.CompilerParams(
            dimension_semantics=("parallel",),
        ),
    )(x_p, w1_p, b1_p, w2_p, b2_p, w3_p, b3_p)

    return out_padded[:B, :out_dim]


def init_params(key, input_size, output_size):
    """Deterministic synthetic init (shapes match the PyTorch module)."""
    h1, h2 = 150, 100
    k1, k2, k3, k4, k5, k6 = jax.random.split(key, 6)
    # Weights stored as (in, out): transpose of PyTorch's (out, in) layout.
    return {
        "w1": jax.random.normal(k1, (input_size, h1), jnp.float32) * 0.05,
        "b1": jax.random.normal(k2, (1, h1), jnp.float32) * 0.05,
        "w2": jax.random.normal(k3, (h1, h2), jnp.float32) * 0.05,
        "b2": jax.random.normal(k4, (1, h2), jnp.float32) * 0.05,
        "w3": jax.random.normal(k5, (h2, output_size), jnp.float32) * 0.05,
        "b3": jax.random.normal(k6, (1, output_size), jnp.float32) * 0.05,
    }


def mlp_reference(x, params):
    """Pure-JAX f32 reference mirroring PyTorch forward semantics."""
    h = jnp.maximum(x @ params["w1"] + params["b1"], 0.0)
    h = jnp.maximum(h @ params["w2"] + params["b2"], 0.0)
    return h @ params["w3"] + params["b3"]


if __name__ == "__main__":
    batch = 8
    input_size = 32
    output_size = 10

    key = jax.random.PRNGKey(0)
    kx, kp = jax.random.split(key)
    x = jax.random.normal(kx, (batch, input_size), jnp.float32)
    params = init_params(kp, input_size, output_size)

    ref = mlp_reference(x, params)

    # Strict check with f32 matmuls (semantics preserved exactly).
    out_f32 = jax.block_until_ready(
        mlp_forward(x, params, compute_dtype=jnp.float32))
    assert out_f32.shape == (batch, output_size)
    assert jnp.allclose(out_f32, ref, atol=1e-5, rtol=1e-5)

    # Default fast path: bf16 matmul operands, f32 accumulation.
    out_bf16 = jax.block_until_ready(mlp_forward(x, params))
    assert out_bf16.shape == (batch, output_size)
    assert jnp.allclose(out_bf16, ref, atol=5e-2, rtol=5e-2)

    print("KERNEL_OK")
</pallas_src>

<mosaic_0001>
module attributes {stable_mosaic.version = 11 : i64} {
  func.func @mlp_kernel(%arg0: i32, %arg1: memref<128x32xf32, #tpu.memory_space<vmem>>, %arg2: memref<32x256xf32, #tpu.memory_space<vmem>>, %arg3: memref<1x256xf32, #tpu.memory_space<vmem>>, %arg4: memref<256x128xf32, #tpu.memory_space<vmem>>, %arg5: memref<1x128xf32, #tpu.memory_space<vmem>>, %arg6: memref<128x128xf32, #tpu.memory_space<vmem>>, %arg7: memref<1x128xf32, #tpu.memory_space<vmem>>, %arg8: memref<128x128xf32, #tpu.memory_space<vmem>>) attributes {dimension_semantics = [#tpu.dimension_semantics<parallel>], iteration_bounds = array<i64: 1>, scalar_prefetch = 0 : i64, scratch_operands = 0 : i64, tpu.core_type = #tpu.core_type<tc>, window_params = [{transform_indices = @transform_0, window_bounds = array<i64: 128, 32>}, {pipeline_mode = #tpu.pipeline_mode<synchronous>, transform_indices = @transform_1, window_bounds = array<i64: 32, 256>}, {pipeline_mode = #tpu.pipeline_mode<synchronous>, transform_indices = @transform_2, window_bounds = array<i64: 1, 256>}, {pipeline_mode = #tpu.pipeline_mode<synchronous>, transform_indices = @transform_3, window_bounds = array<i64: 256, 128>}, {pipeline_mode = #tpu.pipeline_mode<synchronous>, transform_indices = @transform_4, window_bounds = array<i64: 1, 128>}, {pipeline_mode = #tpu.pipeline_mode<synchronous>, transform_indices = @transform_5, window_bounds = array<i64: 128, 128>}, {pipeline_mode = #tpu.pipeline_mode<synchronous>, transform_indices = @transform_6, window_bounds = array<i64: 1, 128>}, {transform_indices = @transform_7, window_bounds = array<i64: 128, 128>}]} {
    %c0 = arith.constant 0 : index
    %c0_0 = arith.constant 0 : index
    %0 = vector.load %arg1[%c0, %c0_0] : memref<128x32xf32, #tpu.memory_space<vmem>>, vector<128x32xf32>
    %c0_1 = arith.constant 0 : index
    %c0_2 = arith.constant 0 : index
    %1 = vector.load %arg2[%c0_1, %c0_2] : memref<32x256xf32, #tpu.memory_space<vmem>>, vector<32x256xf32>
    %cst = arith.constant dense<0.000000e+00> : vector<128x256xf32>
    %2 = tpu.matmul %0, %1, %cst {dimension_numbers = #tpu.dot_dimension_numbers<[1], [0], [0], [1], [0, 0, 1, 1], [], []>} : vector<128x32xf32>, vector<32x256xf32>, vector<128x256xf32> -> vector<128x256xf32>
    %c0_3 = arith.constant 0 : index
    %c0_4 = arith.constant 0 : index
    %3 = vector.load %arg3[%c0_3, %c0_4] : memref<1x256xf32, #tpu.memory_space<vmem>>, vector<1x256xf32>
    %4 = vector.broadcast %3 : vector<1x256xf32> to vector<128x256xf32>
    %5 = arith.addf %2, %4 : vector<128x256xf32>
    %cst_5 = arith.constant 0.000000e+00 : f32
    %6 = vector.broadcast %cst_5 : f32 to vector<128x256xf32>
    %7 = arith.maximumf %5, %6 : vector<128x256xf32>
    %c0_6 = arith.constant 0 : index
    %c0_7 = arith.constant 0 : index
    %8 = vector.load %arg4[%c0_6, %c0_7] : memref<256x128xf32, #tpu.memory_space<vmem>>, vector<256x128xf32>
    %cst_8 = arith.constant dense<0.000000e+00> : vector<128x128xf32>
    %9 = tpu.matmul %7, %8, %cst_8 {dimension_numbers = #tpu.dot_dimension_numbers<[1], [0], [0], [1], [0, 0, 1, 1], [], []>} : vector<128x256xf32>, vector<256x128xf32>, vector<128x128xf32> -> vector<128x128xf32>
    %c0_9 = arith.constant 0 : index
    %c0_10 = arith.constant 0 : index
    %10 = vector.load %arg5[%c0_9, %c0_10] : memref<1x128xf32, #tpu.memory_space<vmem>>, vector<1x128xf32>
    %11 = vector.broadcast %10 : vector<1x128xf32> to vector<128x128xf32>
    %12 = arith.addf %9, %11 : vector<128x128xf32>
    %cst_11 = arith.constant 0.000000e+00 : f32
    %13 = vector.broadcast %cst_11 : f32 to vector<128x128xf32>
    %14 = arith.maximumf %12, %13 : vector<128x128xf32>
    %c0_12 = arith.constant 0 : index
    %c0_13 = arith.constant 0 : index
    %15 = vector.load %arg6[%c0_12, %c0_13] : memref<128x128xf32, #tpu.memory_space<vmem>>, vector<128x128xf32>
    %cst_14 = arith.constant dense<0.000000e+00> : vector<128x128xf32>
    %16 = tpu.matmul %14, %15, %cst_14 {dimension_numbers = #tpu.dot_dimension_numbers<[1], [0], [0], [1], [0, 0, 1, 1], [], []>} : vector<128x128xf32>, vector<128x128xf32>, vector<128x128xf32> -> vector<128x128xf32>
    %c0_15 = arith.constant 0 : index
    %c0_16 = arith.constant 0 : index
    %17 = vector.load %arg7[%c0_15, %c0_16] : memref<1x128xf32, #tpu.memory_space<vmem>>, vector<1x128xf32>
    %18 = vector.broadcast %17 : vector<1x128xf32> to vector<128x128xf32>
    %19 = arith.addf %16, %18 : vector<128x128xf32>
    %c0_17 = arith.constant 0 : index
    %c0_18 = arith.constant 0 : index
    %20 = vector.load %arg8[%c0_17, %c0_18] : memref<128x128xf32, #tpu.memory_space<vmem>>, vector<128x128xf32>
    tpu.vector_store %arg8[%c0_17, %c0_18], %19 {strides = array<i32>} : memref<128x128xf32, #tpu.memory_space<vmem>>, vector<128x128xf32>,
    return
  }
  func.func @transform_0(%arg0: i32) -> (i32, i32) {
    %c0_i32 = arith.constant 0 : i32
    %c0_i32_0 = arith.constant 0 : i32
    return %arg0, %c0_i32 : i32, i32
  }
  func.func @transform_1(%arg0: i32) -> (i32, i32) {
    %c0_i32 = arith.constant 0 : i32
    %c0_i32_0 = arith.constant 0 : i32
    %c0_i32_1 = arith.constant 0 : i32
    return %c0_i32, %c0_i32_0 : i32, i32
  }
  func.func @transform_2(%arg0: i32) -> (i32, i32) {
    %c0_i32 = arith.constant 0 : i32
    %c0_i32_0 = arith.constant 0 : i32
    %c0_i32_1 = arith.constant 0 : i32
    return %c0_i32, %c0_i32_0 : i32, i32
  }
  func.func @transform_3(%arg0: i32) -> (i32, i32) {
    %c0_i32 = arith.constant 0 : i32
    %c0_i32_0 = arith.constant 0 : i32
    %c0_i32_1 = arith.constant 0 : i32
    return %c0_i32, %c0_i32_0 : i32, i32
  }
  func.func @transform_4(%arg0: i32) -> (i32, i32) {
    %c0_i32 = arith.constant 0 : i32
    %c0_i32_0 = arith.constant 0 : i32
    %c0_i32_1 = arith.constant 0 : i32
    return %c0_i32, %c0_i32_0 : i32, i32
  }
  func.func @transform_5(%arg0: i32) -> (i32, i32) {
    %c0_i32 = arith.constant 0 : i32
    %c0_i32_0 = arith.constant 0 : i32
    %c0_i32_1 = arith.constant 0 : i32
    return %c0_i32, %c0_i32_0 : i32, i32
  }
  func.func @transform_6(%arg0: i32) -> (i32, i32) {
    %c0_i32 = arith.constant 0 : i32
    %c0_i32_0 = arith.constant 0 : i32
    %c0_i32_1 = arith.constant 0 : i32
    return %c0_i32, %c0_i32_0 : i32, i32
  }
  func.func @transform_7(%arg0: i32) -> (i32, i32) {
    %c0_i32 = arith.constant 0 : i32
    %c0_i32_0 = arith.constant 0 : i32
    return %arg0, %c0_i32 : i32, i32
  }
}

</mosaic_0001>

<llo_original>
// kernel: tpu_custom_call.1
$region0: #{tpu_custom_call.1}
  #allocation0 [shape = 'u32[]', space=smem, size = 0x4, offset = 0x4, fixed_abs, tag = 'smem constant byte address 0x4 - core index']
  #allocation1 [shape = 'u32[144,128]{1,0:T(1,128)}', space=vmem, size = 0x12000, scoped, tag = 'internal scratch']
  %s0 = inlined_call_operand.vmem [shape: f32[128,32], index: 0, kind: input, shape index: {}]
  %s1 = inlined_call_operand.hbm [shape: f32[32,256], index: 1, kind: input, shape index: {}]
  %s2 = inlined_call_operand.vmem [shape: f32[1,256], index: 2, kind: input, shape index: {}]
  %s3 = inlined_call_operand.hbm [shape: f32[256,128], index: 3, kind: input, shape index: {}]
  %s4 = inlined_call_operand.vmem [shape: f32[1,128], index: 4, kind: input, shape index: {}]
  %s5 = inlined_call_operand.vmem [shape: f32[128,128], index: 5, kind: input, shape index: {}]
  %s6 = inlined_call_operand.vmem [shape: f32[1,128], index: 6, kind: input, shape index: {}]
  %s7 = inlined_call_operand.hbm [shape: f32[128,128], index: 7, kind: output, shape index: {}]
  %s8 = sld [smem:[#allocation0]]
  $region46: #{tpu_custom_call.1} parent=0
    _
  %s10 = ssub.s32 1, %s8
  %s11 = scalar_select 0, %s10, %s8
  $region1: #{tpu_custom_call.1} parent=0
    #allocation2 [shape = 'u8[32768]{0}', space=vmem, size = 0x8000, scoped, tag = 'input window, operand 1, single buffered']
    #allocation3 [shape = 's32[1]{0}', space=sflag, size = 0x4, scoped, tag = 'scoped memory for tpu_custom_call.1']
    #allocation4 [shape = 's32[1]{0}', space=sflag, size = 0x4, scoped, tag = 'scoped memory for tpu_custom_call.1']
    #allocation5 [shape = 'u8[131072]{0}', space=vmem, size = 0x20000, scoped, tag = 'input window, operand 3, single buffered']
    #allocation6 [shape = 's32[1]{0}', space=sflag, size = 0x4, scoped, tag = 'scoped memory for tpu_custom_call.1']
    #allocation7 [shape = 'u8[65536]{0}', space=vmem, size = 0x10000, scoped, tag = 'output window, operand 0, single buffered']
    %12 = vsyncpa [#allocation3], 0
    %13 = vsyncpa [#allocation6], 0
    %14 = vsyncpa [#allocation4], 0
    // Predicated region
    $region2: #{tpu_custom_call.1} parent=1 // pred_check
      _
    $region3: #{tpu_custom_call.1} parent=1 // pred_check_branch
      %16 = sbr.rel (0) target = $region5
    $region4: #{tpu_custom_call.1} parent=1 // pred_region
      _
    $region5: #{tpu_custom_call.1} parent=1 // pred_fallthru
      _
    // Predicated region
    $region6: #{tpu_custom_call.1} parent=1 // pred_check
      _
    $region7: #{tpu_custom_call.1} parent=1 // pred_check_branch
      %18 = sbr.rel (0) target = $region9
    $region8: #{tpu_custom_call.1} parent=1 // pred_region
      %s20 = ssub.s32 1024, 1024
      %21 = vsyncadd [#allocation3], %s20
      %s22 = sshll.u32 [#allocation2], 4
      %s23 = int_to_ptr.vmem [resolvable:$true] %s22
      %28 = dma.hbm_to_vmem [thread:$0]  %s1, 1024, %s23, [#allocation3], 256, 256, 16
    $region9: #{tpu_custom_call.1} parent=1 // pred_fallthru
      _
    // Predicated region
    $region10: #{tpu_custom_call.1} parent=1 // pred_check
      _
    $region11: #{tpu_custom_call.1} parent=1 // pred_check_branch
      %30 = sbr.rel (0) target = $region13
    $region12: #{tpu_custom_call.1} parent=1 // pred_region
      _
    $region13: #{tpu_custom_call.1} parent=1 // pred_fallthru
      _
    // Predicated region
    $region14: #{tpu_custom_call.1} parent=1 // pred_check
      _
    $region15: #{tpu_custom_call.1} parent=1 // pred_check_branch
      %32 = sbr.rel (0) target = $region17
    $region16: #{tpu_custom_call.1} parent=1 // pred_region
      %s34 = ssub.s32 4096, 4096
      %35 = vsyncadd [#allocation6], %s34
      %s36 = sshll.u32 [#allocation5], 4
      %s37 = int_to_ptr.vmem [resolvable:$true] %s36
      %42 = dma.hbm_to_vmem [thread:$0]  %s3, 4096, %s37, [#allocation6], 128, 128, 8
    $region17: #{tpu_custom_call.1} parent=1 // pred_fallthru
      _
    // Predicated region
    $region18: #{tpu_custom_call.1} parent=1 // pred_check
      _
    $region19: #{tpu_custom_call.1} parent=1 // pred_check_branch
      %44 = sbr.rel (0) target = $region21
    $region20: #{tpu_custom_call.1} parent=1 // pred_region
      _
    $region21: #{tpu_custom_call.1} parent=1 // pred_fallthru
      _
    // Predicated region
    $region22: #{tpu_custom_call.1} parent=1 // pred_check
      _
    $region23: #{tpu_custom_call.1} parent=1 // pred_check_branch
      %46 = sbr.rel (0) target = $region25
    $region24: #{tpu_custom_call.1} parent=1 // pred_region
      _
    $region25: #{tpu_custom_call.1} parent=1 // pred_fallthru
      _
    // Predicated region
    $region26: #{tpu_custom_call.1} parent=1 // pred_check
      _
    $region27: #{tpu_custom_call.1} parent=1 // pred_check_branch
      %48 = sbr.rel (0) target = $region29
    $region28: #{tpu_custom_call.1} parent=1 // pred_region
      _
    $region29: #{tpu_custom_call.1} parent=1 // pred_fallthru
      _
    // Predicated region
    $region30: #{tpu_custom_call.1} parent=1 // pred_check
      _
    $region31: #{tpu_custom_call.1} parent=1 // pred_check_branch
      %50 = sbr.rel (0) target = $region33
    $region32: #{tpu_custom_call.1} parent=1 // pred_region
      %51 = dma.done [#allocation3], 1024
    $region33: #{tpu_custom_call.1} parent=1 // pred_fallthru
      _
    // Predicated region
    $region34: #{tpu_custom_call.1} parent=1 // pred_check
      _
    $region35: #{tpu_custom_call.1} parent=1 // pred_check_branch
      %53 = sbr.rel (0) target = $region37
    $region36: #{tpu_custom_call.1} parent=1 // pred_region
      %54 = dma.done [#allocation6], 4096
    $region37: #{tpu_custom_call.1} parent=1 // pred_fallthru
      _
    %v55 = vld [vmem:[%s0] sm:$0xff]
    %v56 = vld [vmem:[%s0 + $0x8] sm:$0xff]
    %v57 = vld [vmem:[%s0 + $0x10] sm:$0xff]
    %v58 = vld [vmem:[%s0 + $0x18] sm:$0xff]
    %v59 = vld [vmem:[%s0 + $0x20] sm:$0xff]
    %v60 = vld [vmem:[%s0 + $0x28] sm:$0xff]
    %v61 = vld [vmem:[%s0 + $0x30] sm:$0xff]
    %v62 = vld [vmem:[%s0 + $0x38] sm:$0xff]
    %v63 = vld [vmem:[%s0 + $0x40] sm:$0xff]
    %v64 = vld [vmem:[%s0 + $0x48] sm:$0xff]
    %v65 = vld [vmem:[%s0 + $0x50] sm:$0xff]
    %v66 = vld [vmem:[%s0 + $0x58] sm:$0xff]
    %v67 = vld [vmem:[%s0 + $0x60] sm:$0xff]
    %v68 = vld [vmem:[%s0 + $0x68] sm:$0xff]
    %v69 = vld [vmem:[%s0 + $0x70] sm:$0xff]
    %v70 = vld [vmem:[%s0 + $0x78] sm:$0xff]
    %v71 = vld [vmem:[#allocation2] sm:$0xff]
    %v72 = vld [vmem:[#allocation2 + $0x8] sm:$0xff]
    %v73 = vld [vmem:[#allocation2 + $0x10] sm:$0xff]
    %v74 = vld [vmem:[#allocation2 + $0x18] sm:$0xff]
    %v75 = vld [vmem:[#allocation2 + $0x20] sm:$0xff]
    %v76 = vld [vmem:[#allocation2 + $0x28] sm:$0xff]
    %v77 = vld [vmem:[#allocation2 + $0x30] sm:$0xff]
    %v78 = vld [vmem:[#allocation2 + $0x38] sm:$0xff]
    %v79 = vld [vmem:[%s2] sm:$0x3]
    %v81 = vlaneseq
    %v82 = vshrl.u32 %v81, 7
    %v83 = vsub.s32 0, %v82
    %v84 = vrot.slane %v79, %v83
    %v85 = vlaneseq
    %v86 = vshrl.u32 %v85, 7
    %v87 = vsub.s32 1, %v86
    %v88 = vrot.slane %v79, %v87
    %vm91 = vcmask 261120
    %v93 = vsel %vm91, %v55, 0
    %v96 = vsel %vm91, %v56, 0
    %v99 = vsel %vm91, %v57, 0
    %v102 = vsel %vm91, %v58, 0
    %v105 = vsel %vm91, %v59, 0
    %v108 = vsel %vm91, %v60, 0
    %v111 = vsel %vm91, %v61, 0
    %v114 = vsel %vm91, %v62, 0
    %v117 = vsel %vm91, %v63, 0
    %v120 = vsel %vm91, %v64, 0
    %v123 = vsel %vm91, %v65, 0
    %v126 = vsel %vm91, %v66, 0
    %v129 = vsel %vm91, %v67, 0
    %v132 = vsel %vm91, %v68, 0
    %v135 = vsel %vm91, %v69, 0
    %v138 = vsel %vm91, %v70, 0
    %140 = vmatprep.subr.mxu0 %v72
    %141 = vmatpush1.msra.mxu0 %v71
    %142 = vmatprep.subr.mxu0 %v74
    %143 = vmatpush1.msra.mxu0 %v73
    %144 = vmatprep.subr.mxu0 %v76
    %145 = vmatpush1.msra.mxu0 %v75
    %146 = vmatprep.subr.mxu0 %v78
    %147 = vmatpush1.msra.mxu0 %v77
    %148 = vmatprep.subr.mxu0 0.0
    %149 = vmatpush1.msra.mxu0 0.0
    %150 = vmatprep.subr.mxu0 0.0
    %151 = vmatpush1.msra.mxu0 0.0
    %152 = vmatprep.subr.mxu0 0.0
    %153 = vmatpush1.msra.mxu0 0.0
    %154 = vmatprep.subr.mxu0 0.0
    %155 = vmatpush1.msra.mxu0 0.0
    %156 = vmatprep.subr.mxu0 0.0
    %157 = vmatpush1.msra.mxu0 0.0
    %158 = vmatprep.subr.mxu0 0.0
    %159 = vmatpush1.msra.mxu0 0.0
    %160 = vmatprep.subr.mxu0 0.0
    %161 = vmatpush1.msra.mxu0 0.0
    %162 = vmatprep.subr.mxu0 0.0
    %163 = vmatpush1.msra.mxu0 0.0
    %164 = vmatprep.subr.mxu0 0.0
    %165 = vmatpush1.msra.mxu0 0.0
    %166 = vmatprep.subr.mxu0 0.0
    %167 = vmatpush1.msra.mxu0 0.0
    %168 = vmatprep.subr.mxu0 0.0
    %169 = vmatpush1.msra.mxu0 0.0
    %170 = vmatprep.subr.mxu0 0.0
    %171 = vmatpush1.msra.mxu0 0.0
    %172 = vmatprep.subr.mxu0 0.0
    %173 = vmatpush1.msra.mxu0 0.0
    %174 = vmatprep.subr.mxu0 0.0
    %175 = vmatpush1.msra.mxu0 0.0
    %176 = vmatprep.subr.mxu0 0.0
    %177 = vmatpush1.msra.mxu0 0.0
    %178 = vmatprep.subr.mxu0 0.0
    %179 = vmatpush1.msra.mxu0 0.0
    %180 = vmatprep.subr.mxu0 0.0
    %181 = vmatpush1.msra.mxu0 0.0
    %182 = vmatprep.subr.mxu0 0.0
    %183 = vmatpush1.msra.mxu0 0.0
    %184 = vmatprep.subr.mxu0 0.0
    %185 = vmatpush1.msra.mxu0 0.0
    %186 = vmatprep.subr.mxu0 0.0
    %187 = vmatpush1.msra.mxu0 0.0
    %188 = vmatprep.subr.mxu0 0.0
    %189 = vmatpush1.msra.mxu0 0.0
    %190 = vmatprep.subr.mxu0 0.0
    %191 = vmatpush1.msra.mxu0 0.0
    %192 = vmatprep.subr.mxu0 0.0
    %193 = vmatpush1.msra.mxu0 0.0
    %194 = vmatprep.subr.mxu0 0.0
    %195 = vmatpush1.msra.mxu0 0.0
    %196 = vmatprep.subr.mxu0 0.0
    %197 = vmatpush1.msra.mxu0 0.0
    %198 = vmatprep.subr.mxu0 0.0
    %199 = vmatpush1.msra.mxu0 0.0
    %200 = vmatprep.subr.mxu0 0.0
    %201 = vmatpush1.msra.mxu0 0.0
    %202 = vmatprep.subr.mxu0 0.0
    %203 = vmatpush1.msra.mxu0 0.0
    %204 = vmatprep.mubr.f32.mxu0 0.0
    %205 = vmatmul.mubr.f32.gmra.mrb[0].mxu0 %v93
    %v206 = vpop.f32.mrb[0].mxu0
    %v207 = vadd.f32 %v84, %v206
    %v208 = vpop.f32.mrb[0].mxu0
    %v209 = vadd.f32 %v88, %v208
    %210 = vmatprep.mubr.f32.mxu0 0.0
    %211 = vmatmul.mubr.f32.gmra.mrb[0].mxu0 %v96
    %v212 = vpop.f32.mrb[0].mxu0
    %v213 = vadd.f32 %v84, %v212
    %v214 = vpop.f32.mrb[0].mxu0
    %v215 = vadd.f32 %v88, %v214
    %216 = vmatprep.mubr.f32.mxu0 0.0
    %217 = vmatmul.mubr.f32.gmra.mrb[0].mxu0 %v99
    %v218 = vpop.f32.mrb[0].mxu0
    %v219 = vadd.f32 %v84, %v218
    %v220 = vpop.f32.mrb[0].mxu0
    %v221 = vadd.f32 %v88, %v220
    %222 = vmatprep.mubr.f32.mxu0 0.0
    %223 = vmatmul.mubr.f32.gmra.mrb[0].mxu0 %v102
    %v224 = vpop.f32.mrb[0].mxu0
    %v225 = vadd.f32 %v84, %v224
    %v226 = vpop.f32.mrb[0].mxu0
    %v227 = vadd.f32 %v88, %v226
    %228 = vmatprep.mubr.f32.mxu0 0.0
    %229 = vmatmul.mubr.f32.gmra.mrb[0].mxu0 %v105
    %v230 = vpop.f32.mrb[0].mxu0
    %v231 = vadd.f32 %v84, %v230
    %v232 = vpop.f32.mrb[0].mxu0
    %v233 = vadd.f32 %v88, %v232
    %234 = vmatprep.mubr.f32.mxu0 0.0
    %235 = vmatmul.mubr.f32.gmra.mrb[0].mxu0 %v108
    %v236 = vpop.f32.mrb[0].mxu0
    %v237 = vadd.f32 %v84, %v236
    %v238 = vpop.f32.mrb[0].mxu0
    %v239 = vadd.f32 %v88, %v238
    %240 = vmatprep.mubr.f32.mxu0 0.0
    %241 = vmatmul.mubr.f32.gmra.mrb[0].mxu0 %v111
    %v242 = vpop.f32.mrb[0].mxu0
    %v243 = vadd.f32 %v84, %v242
    %v244 = vpop.f32.mrb[0].mxu0
    %v245 = vadd.f32 %v88, %v244
    %246 = vmatprep.mubr.f32.mxu0 0.0
    %247 = vmatmul.mubr.f32.gmra.mrb[0].mxu0 %v114
    %v248 = vpop.f32.mrb[0].mxu0
    %v249 = vadd.f32 %v84, %v248
    %v250 = vpop.f32.mrb[0].mxu0
    %v251 = vadd.f32 %v88, %v250
    %252 = vmatprep.mubr.f32.mxu0 0.0
    %253 = vmatmul.mubr.f32.gmra.mrb[0].mxu0 %v117
    %v254 = vpop.f32.mrb[0].mxu0
    %v255 = vadd.f32 %v84, %v254
    %v256 = vpop.f32.mrb[0].mxu0
    %v257 = vadd.f32 %v88, %v256
    %258 = vmatprep.mubr.f32.mxu0 0.0
    %259 = vmatmul.mubr.f32.gmra.mrb[0].mxu0 %v120
    %v260 = vpop.f32.mrb[0].mxu0
    %v261 = vadd.f32 %v84, %v260
    %v262 = vpop.f32.mrb[0].mxu0
    %v263 = vadd.f32 %v88, %v262
    %264 = vmatprep.mubr.f32.mxu0 0.0
    %265 = vmatmul.mubr.f32.gmra.mrb[0].mxu0 %v123
    %v266 = vpop.f32.mrb[0].mxu0
    %v267 = vadd.f32 %v84, %v266
    %v268 = vpop.f32.mrb[0].mxu0
    %v269 = vadd.f32 %v88, %v268
    %270 = vmatprep.mubr.f32.mxu0 0.0
    %271 = vmatmul.mubr.f32.gmra.mrb[0].mxu0 %v126
    %v272 = vpop.f32.mrb[0].mxu0
    %v273 = vadd.f32 %v84, %v272
    %v274 = vpop.f32.mrb[0].mxu0
    %v275 = vadd.f32 %v88, %v274
    %276 = vmatprep.mubr.f32.mxu0 0.0
    %277 = vmatmul.mubr.f32.gmra.mrb[0].mxu0 %v129
    %v278 = vpop.f32.mrb[0].mxu0
    %v279 = vadd.f32 %v84, %v278
    %v280 = vpop.f32.mrb[0].mxu0
    %v281 = vadd.f32 %v88, %v280
    %282 = vmatprep.mubr.f32.mxu0 0.0
    %283 = vmatmul.mubr.f32.gmra.mrb[0].mxu0 %v132
    %v284 = vpop.f32.mrb[0].mxu0
    %v285 = vadd.f32 %v84, %v284
    %v286 = vpop.f32.mrb[0].mxu0
    %v287 = vadd.f32 %v88, %v286
    %288 = vmatprep.mubr.f32.mxu0 0.0
    %289 = vmatmul.mubr.f32.gmra.mrb[0].mxu0 %v135
    %v290 = vpop.f32.mrb[0].mxu0
    %v291 = vadd.f32 %v84, %v290
    %v292 = vpop.f32.mrb[0].mxu0
    %v293 = vadd.f32 %v88, %v292
    %294 = vmatprep.mubr.f32.mxu0 0.0
    %295 = vmatmul.mubr.f32.gmra.mrb[0].mxu0 %v138
    %v296 = vpop.f32.mrb[0].mxu0
    %v297 = vadd.f32 %v84, %v296
    %v298 = vpop.f32.mrb[0].mxu0
    %v299 = vadd.f32 %v88, %v298
    %300 = vdwg.mxu0
    %v301 = vmax.f32 %v207, 0.0
    %v302 = vmax.f32 %v209, 0.0
    %v303 = vmax.f32 %v213, 0.0
    %v304 = vmax.f32 %v215, 0.0
    %v305 = vmax.f32 %v219, 0.0
    %v306 = vmax.f32 %v221, 0.0
    %v307 = vmax.f32 %v225, 0.0
    %v308 = vmax.f32 %v227, 0.0
    %v309 = vmax.f32 %v231, 0.0
    %v310 = vmax.f32 %v233, 0.0
    %v311 = vmax.f32 %v237, 0.0
    %v312 = vmax.f32 %v239, 0.0
    %v313 = vmax.f32 %v243, 0.0
    %v314 = vmax.f32 %v245, 0.0
    %v315 = vmax.f32 %v249, 0.0
    %v316 = vmax.f32 %v251, 0.0
    %v317 = vmax.f32 %v255, 0.0
    %v318 = vmax.f32 %v257, 0.0
    %v319 = vmax.f32 %v261, 0.0
    %v320 = vmax.f32 %v263, 0.0
    %v321 = vmax.f32 %v267, 0.0
    %v322 = vmax.f32 %v269, 0.0
    %v323 = vmax.f32 %v273, 0.0
    %v324 = vmax.f32 %v275, 0.0
    %v325 = vmax.f32 %v279, 0.0
    %v326 = vmax.f32 %v281, 0.0
    %v327 = vmax.f32 %v285, 0.0
    %v328 = vmax.f32 %v287, 0.0
    %v329 = vmax.f32 %v291, 0.0
    %v330 = vmax.f32 %v293, 0.0
    %v331 = vmax.f32 %v297, 0.0
    %v332 = vmax.f32 %v299, 0.0
    %v333 = vld [vmem:[#allocation5] sm:$0xff]
    %v334 = vld [vmem:[#allocation5 + $0x8] sm:$0xff]
    %v335 = vld [vmem:[#allocation5 + $0x10] sm:$0xff]
    %v336 = vld [vmem:[#allocation5 + $0x18] sm:$0xff]
    %v337 = vld [vmem:[#allocation5 + $0x20] sm:$0xff]
    %v338 = vld [vmem:[#allocation5 + $0x28] sm:$0xff]
    %v339 = vld [vmem:[#allocation5 + $0x30] sm:$0xff]
    %v340 = vld [vmem:[#allocation5 + $0x38] sm:$0xff]
    %v341 = vld [vmem:[#allocation5 + $0x40] sm:$0xff]
    %v342 = vld [vmem:[#allocation5 + $0x48] sm:$0xff]
    %v343 = vld [vmem:[#allocation5 + $0x50] sm:$0xff]
    %v344 = vld [vmem:[#allocation5 + $0x58] sm:$0xff]
    %v345 = vld [vmem:[#allocation5 + $0x60] sm:$0xff]
    %v346 = vld [vmem:[#allocation5 + $0x68] sm:$0xff]
    %v347 = vld [vmem:[#allocation5 + $0x70] sm:$0xff]
    %v348 = vld [vmem:[#allocation5 + $0x78] sm:$0xff]
    %v349 = vld [vmem:[#allocation5 + $0x80] sm:$0xff]
    %v350 = vld [vmem:[#allocation5 + $0x88] sm:$0xff]
    %v351 = vld [vmem:[#allocation5 + $0x90] sm:$0xff]
    %v352 = vld [vmem:[#allocation5 + $0x98] sm:$0xff]
    %v353 = vld [vmem:[#allocation5 + $0xa0] sm:$0xff]
    %v354 = vld [vmem:[#allocation5 + $0xa8] sm:$0xff]
    %v355 = vld [vmem:[#allocation5 + $0xb0] sm:$0xff]
    %v356 = vld [vmem:[#allocation5 + $0xb8] sm:$0xff]
    %v357 = vld [vmem:[#allocation5 + $0xc0] sm:$0xff]
    %v358 = vld [vmem:[#allocation5 + $0xc8] sm:$0xff]
    %v359 = vld [vmem:[#allocation5 + $0xd0] sm:$0xff]
    %v360 = vld [vmem:[#allocation5 + $0xd8] sm:$0xff]
    %v361 = vld [vmem:[#allocation5 + $0xe0] sm:$0xff]
    %v362 = vld [vmem:[#allocation5 + $0xe8] sm:$0xff]
    %v363 = vld [vmem:[#allocation5 + $0xf0] sm:$0xff]
    %v364 = vld [vmem:[#allocation5 + $0xf8] sm:$0xff]
    %v365 = vld [vmem:[%s4] sm:$0x1]
    %v367 = vlaneseq
    %v368 = vshrl.u32 %v367, 7
    %v369 = vsub.s32 0, %v368
    %v370 = vrot.slane %v365, %v369
    %372 = vmatprep.subr.mxu0 0.0
    %373 = vmatpush1.msra.mxu0 %v333
    %374 = vmatprep.subr.mxu0 0.0
    %375 = vmatpush1.msra.mxu0 %v334
    %376 = vmatprep.subr.mxu0 0.0
    %377 = vmatpush1.msra.mxu0 %v335
    %378 = vmatprep.subr.mxu0 0.0
    %379 = vmatpush1.msra.mxu0 %v336
    %380 = vmatprep.subr.mxu0 0.0
    %381 = vmatpush1.msra.mxu0 %v337
    %382 = vmatprep.subr.mxu0 0.0
    %383 = vmatpush1.msra.mxu0 %v338
    %384 = vmatprep.subr.mxu0 0.0
    %385 = vmatpush1.msra.mxu0 %v339
    %386 = vmatprep.subr.mxu0 0.0
    %387 = vmatpush1.msra.mxu0 %v340
    %388 = vmatprep.subr.mxu0 0.0
    %389 = vmatpush1.msra.mxu0 %v341
    %390 = vmatprep.subr.mxu0 0.0
    %391 = vmatpush1.msra.mxu0 %v342
    %392 = vmatprep.subr.mxu0 0.0
    %393 = vmatpush1.msra.mxu0 %v343
    %394 = vmatprep.subr.mxu0 0.0
    %395 = vmatpush1.msra.mxu0 %v344
    %396 = vmatprep.subr.mxu0 0.0
    %397 = vmatpush1.msra.mxu0 %v345
    %398 = vmatprep.subr.mxu0 0.0
    %399 = vmatpush1.msra.mxu0 %v346
    %400 = vmatprep.subr.mxu0 0.0
    %401 = vmatpush1.msra.mxu0 %v347
    %402 = vmatprep.subr.mxu0 0.0
    %403 = vmatpush1.msra.mxu0 %v348
    %404 = vmatprep.subr.mxu0 0.0
    %405 = vmatpush1.msra.mxu0 %v349
    %406 = vmatprep.subr.mxu0 0.0
    %407 = vmatpush1.msra.mxu0 %v350
    %408 = vmatprep.subr.mxu0 0.0
    %409 = vmatpush1.msra.mxu0 %v351
    %410 = vmatprep.subr.mxu0 0.0
    %411 = vmatpush1.msra.mxu0 %v352
    %412 = vmatprep.subr.mxu0 0.0
    %413 = vmatpush1.msra.mxu0 %v353
    %414 = vmatprep.subr.mxu0 0.0
    %415 = vmatpush1.msra.mxu0 %v354
    %416 = vmatprep.subr.mxu0 0.0
    %417 = vmatpush1.msra.mxu0 %v355
    %418 = vmatprep.subr.mxu0 0.0
    %419 = vmatpush1.msra.mxu0 %v356
    %420 = vmatprep.subr.mxu0 0.0
    %421 = vmatpush1.msra.mxu0 %v357
    %422 = vmatprep.subr.mxu0 0.0
    %423 = vmatpush1.msra.mxu0 %v358
    %424 = vmatprep.subr.mxu0 0.0
    %425 = vmatpush1.msra.mxu0 %v359
    %426 = vmatprep.subr.mxu0 0.0
    %427 = vmatpush1.msra.mxu0 %v360
    %428 = vmatprep.subr.mxu0 0.0
    %429 = vmatpush1.msra.mxu0 %v361
    %430 = vmatprep.subr.mxu0 0.0
    %431 = vmatpush1.msra.mxu0 %v362
    %432 = vmatprep.subr.mxu0 0.0
    %433 = vmatpush1.msra.mxu0 %v363
    %434 = vmatprep.subr.mxu0 0.0
    %435 = vmatpush1.msra.mxu0 %v364
    %436 = vmatprep.mubr.f32.mxu0 %v302
    %437 = vmatmul.mubr.f32.gmra.mrb[0].mxu0 %v301
    %v438 = vpop.f32.mrb[0].mxu0
    %v439 = vadd.f32 %v370, %v438
    %v440 = vpop.f32.mrb[0].mxu0
    %441 = vmatprep.mubr.f32.mxu0 %v304
    %442 = vmatmul.mubr.f32.gmra.mrb[0].mxu0 %v303
    %v443 = vpop.f32.mrb[0].mxu0
    %v444 = vadd.f32 %v370, %v443
    %v445 = vpop.f32.mrb[0].mxu0
    %446 = vmatprep.mubr.f32.mxu0 %v306
    %447 = vmatmul.mubr.f32.gmra.mrb[0].mxu0 %v305
    %v448 = vpop.f32.mrb[0].mxu0
    %v449 = vadd.f32 %v370, %v448
    %v450 = vpop.f32.mrb[0].mxu0
    %451 = vmatprep.mubr.f32.mxu0 %v308
    %452 = vmatmul.mubr.f32.gmra.mrb[0].mxu0 %v307
    %v453 = vpop.f32.mrb[0].mxu0
    %v454 = vadd.f32 %v370, %v453
    %v455 = vpop.f32.mrb[0].mxu0
    %456 = vmatprep.mubr.f32.mxu0 %v310
    %457 = vmatmul.mubr.f32.gmra.mrb[0].mxu0 %v309
    %v458 = vpop.f32.mrb[0].mxu0
    %v459 = vadd.f32 %v370, %v458
    %v460 = vpop.f32.mrb[0].mxu0
    %461 = vmatprep.mubr.f32.mxu0 %v312
    %462 = vmatmul.mubr.f32.gmra.mrb[0].mxu0 %v311
    %v463 = vpop.f32.mrb[0].mxu0
    %v464 = vadd.f32 %v370, %v463
    %v465 = vpop.f32.mrb[0].mxu0
    %466 = vmatprep.mubr.f32.mxu0 %v314
    %467 = vmatmul.mubr.f32.gmra.mrb[0].mxu0 %v313
    %v468 = vpop.f32.mrb[0].mxu0
    %v469 = vadd.f32 %v370, %v468
    %v470 = vpop.f32.mrb[0].mxu0
    %471 = vmatprep.mubr.f32.mxu0 %v316
    %472 = vmatmul.mubr.f32.gmra.mrb[0].mxu0 %v315
    %v473 = vpop.f32.mrb[0].mxu0
    %v474 = vadd.f32 %v370, %v473
    %v475 = vpop.f32.mrb[0].mxu0
    %476 = vmatprep.mubr.f32.mxu0 %v318
    %477 = vmatmul.mubr.f32.gmra.mrb[0].mxu0 %v317
    %v478 = vpop.f32.mrb[0].mxu0
    %v479 = vadd.f32 %v370, %v478
    %v480 = vpop.f32.mrb[0].mxu0
    %481 = vmatprep.mubr.f32.mxu0 %v320
    %482 = vmatmul.mubr.f32.gmra.mrb[0].mxu0 %v319
    %v483 = vpop.f32.mrb[0].mxu0
    %v484 = vadd.f32 %v370, %v483
    %v485 = vpop.f32.mrb[0].mxu0
    %486 = vmatprep.mubr.f32.mxu0 %v322
    %487 = vmatmul.mubr.f32.gmra.mrb[0].mxu0 %v321
    %v488 = vpop.f32.mrb[0].mxu0
    %v489 = vadd.f32 %v370, %v488
    %v490 = vpop.f32.mrb[0].mxu0
    %491 = vmatprep.mubr.f32.mxu0 %v324
    %492 = vmatmul.mubr.f32.gmra.mrb[0].mxu0 %v323
    %v493 = vpop.f32.mrb[0].mxu0
    %v494 = vadd.f32 %v370, %v493
    %v495 = vpop.f32.mrb[0].mxu0
    %496 = vmatprep.mubr.f32.mxu0 %v326
    %497 = vmatmul.mubr.f32.gmra.mrb[0].mxu0 %v325
    %v498 = vpop.f32.mrb[0].mxu0
    %v499 = vadd.f32 %v370, %v498
    %v500 = vpop.f32.mrb[0].mxu0
    %501 = vmatprep.mubr.f32.mxu0 %v328
    %502 = vmatmul.mubr.f32.gmra.mrb[0].mxu0 %v327
    %v503 = vpop.f32.mrb[0].mxu0
    %v504 = vadd.f32 %v370, %v503
    %v505 = vpop.f32.mrb[0].mxu0
    %506 = vmatprep.mubr.f32.mxu0 %v330
    %507 = vmatmul.mubr.f32.gmra.mrb[0].mxu0 %v329
    %v508 = vpop.f32.mrb[0].mxu0
    %v509 = vadd.f32 %v370, %v508
    %v510 = vpop.f32.mrb[0].mxu0
    %511 = vmatprep.mubr.f32.mxu0 %v332
    %512 = vmatmul.mubr.f32.gmra.mrb[0].mxu0 %v331
    %v513 = vpop.f32.mrb[0].mxu0
    %v514 = vadd.f32 %v370, %v513
    %v515 = vpop.f32.mrb[0].mxu0
    %516 = vdwg.mxu0
    %v517 = vmax.f32 %v439, 0.0
    %v518 = vmax.f32 %v444, 0.0
    %v519 = vmax.f32 %v449, 0.0
    %v520 = vmax.f32 %v454, 0.0
    %v521 = vmax.f32 %v459, 0.0
    %v522 = vmax.f32 %v464, 0.0
    %v523 = vmax.f32 %v469, 0.0
    %v524 = vmax.f32 %v474, 0.0
    %v525 = vmax.f32 %v479, 0.0
    %v526 = vmax.f32 %v484, 0.0
    %v527 = vmax.f32 %v489, 0.0
    %v528 = vmax.f32 %v494, 0.0
    %v529 = vmax.f32 %v499, 0.0
    %v530 = vmax.f32 %v504, 0.0
    %v531 = vmax.f32 %v509, 0.0
    %v532 = vmax.f32 %v514, 0.0
    %v533 = vld [vmem:[%s5] sm:$0xff]
    %v534 = vld [vmem:[%s5 + $0x8] sm:$0xff]
    %v535 = vld [vmem:[%s5 + $0x10] sm:$0xff]
    %v536 = vld [vmem:[%s5 + $0x18] sm:$0xff]
    %v537 = vld [vmem:[%s5 + $0x20] sm:$0xff]
    %v538 = vld [vmem:[%s5 + $0x28] sm:$0xff]
    %v539 = vld [vmem:[%s5 + $0x30] sm:$0xff]
    %v540 = vld [vmem:[%s5 + $0x38] sm:$0xff]
    %v541 = vld [vmem:[%s5 + $0x40] sm:$0xff]
    %v542 = vld [vmem:[%s5 + $0x48] sm:$0xff]
    %v543 = vld [vmem:[%s5 + $0x50] sm:$0xff]
    %v544 = vld [vmem:[%s5 + $0x58] sm:$0xff]
    %v545 = vld [vmem:[%s5 + $0x60] sm:$0xff]
    %v546 = vld [vmem:[%s5 + $0x68] sm:$0xff]
    %v547 = vld [vmem:[%s5 + $0x70] sm:$0xff]
    %v548 = vld [vmem:[%s5 + $0x78] sm:$0xff]
    %v549 = vld [vmem:[%s6] sm:$0x1]
    %v551 = vlaneseq
    %v552 = vshrl.u32 %v551, 7
    %v553 = vsub.s32 0, %v552
    %v554 = vrot.slane %v549, %v553
    %556 = vmatprep.subr.mxu0 0.0
    %557 = vmatpush1.msra.mxu0 %v533
    %558 = vmatprep.subr.mxu0 0.0
    %559 = vmatpush1.msra.mxu0 %v534
    %560 = vmatprep.subr.mxu0 0.0
    %561 = vmatpush1.msra.mxu0 %v535
    %562 = vmatprep.subr.mxu0 0.0
    %563 = vmatpush1.msra.mxu0 %v536
    %564 = vmatprep.subr.mxu0 0.0
    %565 = vmatpush1.msra.mxu0 %v537
    %566 = vmatprep.subr.mxu0 0.0
    %567 = vmatpush1.msra.mxu0 %v538
    %568 = vmatprep.subr.mxu0 0.0
    %569 = vmatpush1.msra.mxu0 %v539
    %570 = vmatprep.subr.mxu0 0.0
    %571 = vmatpush1.msra.mxu0 %v540
    %572 = vmatprep.subr.mxu0 0.0
    %573 = vmatpush1.msra.mxu0 %v541
    %574 = vmatprep.subr.mxu0 0.0
    %575 = vmatpush1.msra.mxu0 %v542
    %576 = vmatprep.subr.mxu0 0.0
    %577 = vmatpush1.msra.mxu0 %v543
    %578 = vmatprep.subr.mxu0 0.0
    %579 = vmatpush1.msra.mxu0 %v544
    %580 = vmatprep.subr.mxu0 0.0
    %581 = vmatpush1.msra.mxu0 %v545
    %582 = vmatprep.subr.mxu0 0.0
    %583 = vmatpush1.msra.mxu0 %v546
    %584 = vmatprep.subr.mxu0 0.0
    %585 = vmatpush1.msra.mxu0 %v547
    %586 = vmatprep.subr.mxu0 0.0
    %587 = vmatpush1.msra.mxu0 %v548
    %588 = vmatprep.subr.mxu0 0.0
    %589 = vmatpush1.msra.mxu0 0.0
    %590 = vmatprep.subr.mxu0 0.0
    %591 = vmatpush1.msra.mxu0 0.0
    %592 = vmatprep.subr.mxu0 0.0
    %593 = vmatpush1.msra.mxu0 0.0
    %594 = vmatprep.subr.mxu0 0.0
    %595 = vmatpush1.msra.mxu0 0.0
    %596 = vmatprep.subr.mxu0 0.0
    %597 = vmatpush1.msra.mxu0 0.0
    %598 = vmatprep.subr.mxu0 0.0
    %599 = vmatpush1.msra.mxu0 0.0
    %600 = vmatprep.subr.mxu0 0.0
    %601 = vmatpush1.msra.mxu0 0.0
    %602 = vmatprep.subr.mxu0 0.0
    %603 = vmatpush1.msra.mxu0 0.0
    %604 = vmatprep.subr.mxu0 0.0
    %605 = vmatpush1.msra.mxu0 0.0
    %606 = vmatprep.subr.mxu0 0.0
    %607 = vmatpush1.msra.mxu0 0.0
    %608 = vmatprep.subr.mxu0 0.0
    %609 = vmatpush1.msra.mxu0 0.0
    %610 = vmatprep.subr.mxu0 0.0
    %611 = vmatpush1.msra.mxu0 0.0
    %612 = vmatprep.subr.mxu0 0.0
    %613 = vmatpush1.msra.mxu0 0.0
    %614 = vmatprep.subr.mxu0 0.0
    %615 = vmatpush1.msra.mxu0 0.0
    %616 = vmatprep.subr.mxu0 0.0
    %617 = vmatpush1.msra.mxu0 0.0
    %618 = vmatprep.subr.mxu0 0.0
    %619 = vmatpush1.msra.mxu0 0.0
    %620 = vmatprep.mubr.f32.mxu0 0.0
    %621 = vmatmul.mubr.f32.gmra.mrb[0].mxu0 %v517
    %v622 = vpop.f32.mrb[0].mxu0
    %v623 = vadd.f32 %v554, %v622
    %v624 = vpop.f32.mrb[0].mxu0
    %625 = vmatprep.mubr.f32.mxu0 0.0
    %626 = vmatmul.mubr.f32.gmra.mrb[0].mxu0 %v518
    %v627 = vpop.f32.mrb[0].mxu0
    %v628 = vadd.f32 %v554, %v627
    %v629 = vpop.f32.mrb[0].mxu0
    %630 = vmatprep.mubr.f32.mxu0 0.0
    %631 = vmatmul.mubr.f32.gmra.mrb[0].mxu0 %v519
    %v632 = vpop.f32.mrb[0].mxu0
    %v633 = vadd.f32 %v554, %v632
    %v634 = vpop.f32.mrb[0].mxu0
    %635 = vmatprep.mubr.f32.mxu0 0.0
    %636 = vmatmul.mubr.f32.gmra.mrb[0].mxu0 %v520
    %v637 = vpop.f32.mrb[0].mxu0
    %v638 = vadd.f32 %v554, %v637
    %v639 = vpop.f32.mrb[0].mxu0
    %640 = vmatprep.mubr.f32.mxu0 0.0
    %641 = vmatmul.mubr.f32.gmra.mrb[0].mxu0 %v521
    %v642 = vpop.f32.mrb[0].mxu0
    %v643 = vadd.f32 %v554, %v642
    %v644 = vpop.f32.mrb[0].mxu0
    %645 = vmatprep.mubr.f32.mxu0 0.0
    %646 = vmatmul.mubr.f32.gmra.mrb[0].mxu0 %v522
    %v647 = vpop.f32.mrb[0].mxu0
    %v648 = vadd.f32 %v554, %v647
    %v649 = vpop.f32.mrb[0].mxu0
    %650 = vmatprep.mubr.f32.mxu0 0.0
    %651 = vmatmul.mubr.f32.gmra.mrb[0].mxu0 %v523
    %v652 = vpop.f32.mrb[0].mxu0
    %v653 = vadd.f32 %v554, %v652
    %v654 = vpop.f32.mrb[0].mxu0
    %655 = vmatprep.mubr.f32.mxu0 0.0
    %656 = vmatmul.mubr.f32.gmra.mrb[0].mxu0 %v524
    %v657 = vpop.f32.mrb[0].mxu0
    %v658 = vadd.f32 %v554, %v657
    %v659 = vpop.f32.mrb[0].mxu0
    %660 = vmatprep.mubr.f32.mxu0 0.0
    %661 = vmatmul.mubr.f32.gmra.mrb[0].mxu0 %v525
    %v662 = vpop.f32.mrb[0].mxu0
    %v663 = vadd.f32 %v554, %v662
    %v664 = vpop.f32.mrb[0].mxu0
    %665 = vmatprep.mubr.f32.mxu0 0.0
    %666 = vmatmul.mubr.f32.gmra.mrb[0].mxu0 %v526
    %v667 = vpop.f32.mrb[0].mxu0
    %v668 = vadd.f32 %v554, %v667
    %v669 = vpop.f32.mrb[0].mxu0
    %670 = vmatprep.mubr.f32.mxu0 0.0
    %671 = vmatmul.mubr.f32.gmra.mrb[0].mxu0 %v527
    %v672 = vpop.f32.mrb[0].mxu0
    %v673 = vadd.f32 %v554, %v672
    %v674 = vpop.f32.mrb[0].mxu0
    %675 = vmatprep.mubr.f32.mxu0 0.0
    %676 = vmatmul.mubr.f32.gmra.mrb[0].mxu0 %v528
    %v677 = vpop.f32.mrb[0].mxu0
    %v678 = vadd.f32 %v554, %v677
    %v679 = vpop.f32.mrb[0].mxu0
    %680 = vmatprep.mubr.f32.mxu0 0.0
    %681 = vmatmul.mubr.f32.gmra.mrb[0].mxu0 %v529
    %v682 = vpop.f32.mrb[0].mxu0
    %v683 = vadd.f32 %v554, %v682
    %v684 = vpop.f32.mrb[0].mxu0
    %685 = vmatprep.mubr.f32.mxu0 0.0
    %686 = vmatmul.mubr.f32.gmra.mrb[0].mxu0 %v530
    %v687 = vpop.f32.mrb[0].mxu0
    %v688 = vadd.f32 %v554, %v687
    %v689 = vpop.f32.mrb[0].mxu0
    %690 = vmatprep.mubr.f32.mxu0 0.0
    %691 = vmatmul.mubr.f32.gmra.mrb[0].mxu0 %v531
    %v692 = vpop.f32.mrb[0].mxu0
    %v693 = vadd.f32 %v554, %v692
    %v694 = vpop.f32.mrb[0].mxu0
    %695 = vmatprep.mubr.f32.mxu0 0.0
    %696 = vmatmul.mubr.f32.gmra.mrb[0].mxu0 %v532
    %v697 = vpop.f32.mrb[0].mxu0
    %v698 = vadd.f32 %v554, %v697
    %v699 = vpop.f32.mrb[0].mxu0
    %700 = vdwg.mxu0
    %701 = vst [vmem:[#allocation7] sm:$0xff] %v623
    %702 = vst [vmem:[#allocation7 + $0x8] sm:$0xff] %v628
    %703 = vst [vmem:[#allocation7 + $0x10] sm:$0xff] %v633
    %704 = vst [vmem:[#allocation7 + $0x18] sm:$0xff] %v638
    %705 = vst [vmem:[#allocation7 + $0x20] sm:$0xff] %v643
    %706 = vst [vmem:[#allocation7 + $0x28] sm:$0xff] %v648
    %707 = vst [vmem:[#allocation7 + $0x30] sm:$0xff] %v653
    %708 = vst [vmem:[#allocation7 + $0x38] sm:$0xff] %v658
    %709 = vst [vmem:[#allocation7 + $0x40] sm:$0xff] %v663
    %710 = vst [vmem:[#allocation7 + $0x48] sm:$0xff] %v668
    %711 = vst [vmem:[#allocation7 + $0x50] sm:$0xff] %v673
    %712 = vst [vmem:[#allocation7 + $0x58] sm:$0xff] %v678
    %713 = vst [vmem:[#allocation7 + $0x60] sm:$0xff] %v683
    %714 = vst [vmem:[#allocation7 + $0x68] sm:$0xff] %v688
    %715 = vst [vmem:[#allocation7 + $0x70] sm:$0xff] %v693
    %716 = vst [vmem:[#allocation7 + $0x78] sm:$0xff] %v698
    // Predicated region
    $region38: #{tpu_custom_call.1} parent=1 // pred_check
      _
    $region39: #{tpu_custom_call.1} parent=1 // pred_check_branch
      %718 = sbr.rel (0) target = $region41
    $region40: #{tpu_custom_call.1} parent=1 // pred_region
      %s720 = ssub.s32 2048, 2048
      %721 = vsyncadd [#allocation4], %s720
      %s722 = sshll.u32 [#allocation7], 4
      %s723 = int_to_ptr.vmem [resolvable:$true] %s722
      %728 = dma.vmem_to_hbm [thread:$0]  %s723, 2048, %s7, [#allocation4], 128, 128, 8
    $region41: #{tpu_custom_call.1} parent=1 // pred_fallthru
      _
    // Predicated region
    $region42: #{tpu_custom_call.1} parent=1 // pred_check
      _
    $region43: #{tpu_custom_call.1} parent=1 // pred_check_branch
      %730 = sbr.rel (0) target = $region45
    $region44: #{tpu_custom_call.1} parent=1 // pred_region
      %731 = dma.done [#allocation4], 2048
    $region45: #{tpu_custom_call.1} parent=1 // pred_fallthru
      _
    %732 = vsyncpa [#allocation3], 1
    %733 = vsyncpa [#allocation6], 1
    %734 = vsyncpa [#allocation4], 1

</llo_original>
